<compile_context>
chip_gen: v5e
topology: v5e:2x2
jax: 0.10.0
libtpu: 0.0.40
codegen_flags: <defaults>
</compile_context>

<pallas_src>
import jax
import jax.numpy as jnp
from jax.experimental import pallas as pl
from jax.experimental.pallas import tpu as pltpu


# ~2 MiB output blocks: big enough to sit near HBM-write roofline, small enough
# that (2x double-buffered output) + (2x double-buffered input slab) stays well
# under the 16 MiB scoped-VMEM default on v5e (and trivially under v7x's 64 MiB).
_TARGET_BLOCK_BYTES = 2 * 1024 * 1024


def _broadcast_flat_kernel(sym_ref, out_ref):
    # sym_ref : (TILE_R, C)          lane-dense slab of the sliced symbol library.
    # out_ref : (TILE_B, TILE_R, C)  TILE_B batch replicas written in one step.
    out_ref[...] = jnp.broadcast_to(sym_ref[...][None, :, :], out_ref.shape)


def _broadcast_3d_kernel(sym_ref, out_ref):
    # sym_ref : (S, D)
    # out_ref : (TILE_B, S, D)
    out_ref[...] = jnp.broadcast_to(sym_ref[...][None, :, :], out_ref.shape)


def positional_symbol_retriever(x, symbol_library):
    """Equivalent of PositionalSymbolRetriever.forward.

    x              : (B, S, D)  -- only its shape is used (positions 0..S-1)
    symbol_library : (max_length, symbol_dim)
    returns        : (B, S, symbol_dim)
    """
    batch_size, seq_len, _ = x.shape
    max_length, symbol_dim = symbol_library.shape
    assert seq_len <= max_length, "seq_len exceeds symbol library max_length"

    dtype = symbol_library.dtype
    itemsize = jnp.dtype(dtype).itemsize

    # Wrapper-side slice of positions 0..S-1 (layout plumbing; the hot path —
    # the B*S*D HBM write — stays inside the kernel).
    if seq_len == max_length:
        sym = symbol_library
    else:
        sym = jax.lax.slice(symbol_library, (0, 0), (seq_len, symbol_dim))

    flat = seq_len * symbol_dim

    if flat % 128 == 0:
        # ---------------- lane-dense path ----------------
        # Re-view each batch replica as (rows, lane) with lane a multiple of 128.
        lane = 128
        while flat % (lane * 2) == 0 and lane * 2 <= 2048:
            lane *= 2
        rows = flat // lane

        # Rows per block: fill the target block size; multiple of 8 when we must
        # tile the row axis (keeps sublane layout dense; full extent otherwise).
        max_rows = max(1, _TARGET_BLOCK_BYTES // (lane * itemsize))
        if rows <= max_rows:
            tile_r = rows
        else:
            tile_r = max(8, (max_rows // 8) * 8)

        # Batch replicas per block: fatten each output DMA up to the target.
        block_row_bytes = tile_r * lane * itemsize
        tile_b = max(1, min(batch_size, _TARGET_BLOCK_BYTES // block_row_bytes))

        grid = (pl.cdiv(batch_size, tile_b), pl.cdiv(rows, tile_r))

        sym_flat = sym.reshape(rows, lane)

        grid_spec = pltpu.PrefetchScalarGridSpec(
            num_scalar_prefetch=0,
            grid=grid,
            in_specs=[
                # Block index ignores the batch axis -> slab stays VMEM-resident
                # while batch tiles are swept.
                pl.BlockSpec((tile_r, lane), lambda b, r: (r, 0)),
            ],
            out_specs=pl.BlockSpec((tile_b, tile_r, lane),
                                   lambda b, r: (b, r, 0)),
        )

        out_flat = pl.pallas_call(
            _broadcast_flat_kernel,
            out_shape=jax.ShapeDtypeStruct((batch_size, rows, lane), dtype),
            grid_spec=grid_spec,
            compiler_params=pltpu.CompilerParams(
                dimension_semantics=("parallel", "parallel")),
        )(sym_flat)

        return out_flat.reshape(batch_size, seq_len, symbol_dim)

    # ---------------- fallback path (flat not a multiple of 128) ----------------
    # Full-extent (S, D) blocks avoid the (8,128) divisibility constraint for
    # arbitrary seq_len / symbol_dim; still writes tile_b batch replicas per step.
    # TODO(synk): if seq_len*symbol_dim alone exceeds VMEM this path would need
    # sublane padding + seq tiling; not required for the shapes this module targets.
    block_row_bytes = flat * itemsize
    tile_b = max(1, min(batch_size, _TARGET_BLOCK_BYTES // block_row_bytes))
    grid = (pl.cdiv(batch_size, tile_b),)

    grid_spec = pltpu.PrefetchScalarGridSpec(
        num_scalar_prefetch=0,
        grid=grid,
        in_specs=[pl.BlockSpec((seq_len, symbol_dim), lambda b: (0, 0))],
        out_specs=pl.BlockSpec((tile_b, seq_len, symbol_dim),
                               lambda b: (b, 0, 0)),
    )

    return pl.pallas_call(
        _broadcast_3d_kernel,
        out_shape=jax.ShapeDtypeStruct((batch_size, seq_len, symbol_dim), dtype),
        grid_spec=grid_spec,
        compiler_params=pltpu.CompilerParams(
            dimension_semantics=("parallel",)),
    )(sym)


if __name__ == "__main__":
    # Deterministic setup, small shapes consistent with the module.
    symbol_dim = 32
    max_length = 16
    batch_size = 2
    seq_len = 8
    dim = 32

    key = jax.random.PRNGKey(0)
    k_sym, k_x = jax.random.split(key)

    # nn.Embedding default init ~ N(0, 1); deterministic synthetic parameters here.
    symbol_library = jax.random.normal(k_sym, (max_length, symbol_dim),
                                       dtype=jnp.float32)
    x = jax.random.normal(k_x, (batch_size, seq_len, dim), dtype=jnp.float32)

    out = positional_symbol_retriever(x, symbol_library)
    out = jax.block_until_ready(out)

    # Reference check (pure JAX): first seq_len rows broadcast across batch.
    ref = jnp.broadcast_to(
        symbol_library[:seq_len][None, :, :],
        (batch_size, seq_len, symbol_dim),
    )
    assert out.shape == (batch_size, seq_len, symbol_dim)
    assert jnp.array_equal(out, ref)

    print("KERNEL_OK")
</pallas_src>

<mosaic_0001>
module attributes {stable_mosaic.version = 11 : i64} {
  func.func @_broadcast_flat_kernel(%arg0: i32, %arg1: i32, %arg2: memref<1x256xf32, #tpu.memory_space<vmem>>, %arg3: memref<2x1x256xf32, #tpu.memory_space<vmem>>) attributes {dimension_semantics = [#tpu.dimension_semantics<parallel>, #tpu.dimension_semantics<parallel>], iteration_bounds = array<i64: 1, 1>, scalar_prefetch = 0 : i64, scratch_operands = 0 : i64, tpu.core_type = #tpu.core_type<tc>, window_params = [{transform_indices = @transform_0, window_bounds = array<i64: 1, 256>}, {transform_indices = @transform_1, window_bounds = array<i64: 2, 1, 256>}]} {
    %c0 = arith.constant 0 : index
    %c0_0 = arith.constant 0 : index
    %0 = vector.load %arg2[%c0, %c0_0] : memref<1x256xf32, #tpu.memory_space<vmem>>, vector<1x256xf32>
    %1 = vector.shape_cast %0 : vector<1x256xf32> to vector<1x1x256xf32>
    %2 = vector.shape_cast %1 : vector<1x1x256xf32> to vector<1x1x256xf32>
    %3 = vector.broadcast %2 : vector<1x1x256xf32> to vector<2x1x256xf32>
    %c0_1 = arith.constant 0 : index
    %c0_2 = arith.constant 0 : index
    %c0_3 = arith.constant 0 : index
    %4 = vector.load %arg3[%c0_1, %c0_2, %c0_3] : memref<2x1x256xf32, #tpu.memory_space<vmem>>, vector<2x1x256xf32>
    tpu.vector_store %arg3[%c0_1, %c0_2, %c0_3], %3 {strides = array<i32>} : memref<2x1x256xf32, #tpu.memory_space<vmem>>, vector<2x1x256xf32>,
    return
  }
  func.func @transform_0(%arg0: i32, %arg1: i32) -> (i32, i32) {
    %c0_i32 = arith.constant 0 : i32
    %c0_i32_0 = arith.constant 0 : i32
    return %arg1, %c0_i32 : i32, i32
  }
  func.func @transform_1(%arg0: i32, %arg1: i32) -> (i32, i32, i32) {
    %c0_i32 = arith.constant 0 : i32
    %c0_i32_0 = arith.constant 0 : i32
    return %arg0, %arg1, %c0_i32 : i32, i32, i32
  }
}

</mosaic_0001>

<llo_original>
// kernel: tpu_custom_call.1
$region0: #{tpu_custom_call.1}
  #allocation0 [shape = 'u32[]', space=smem, size = 0x4, offset = 0x4, fixed_abs, tag = 'smem constant byte address 0x4 - core index']
  #allocation1 [shape = 'u32[72,128]{1,0:T(1,128)}', space=vmem, size = 0x9000, scoped, tag = 'internal scratch']
  %s0 = inlined_call_operand.hbm [shape: f32[1,256], index: 0, kind: input, shape index: {}]
  %s1 = inlined_call_operand.hbm [shape: f32[2,1,256], index: 1, kind: output, shape index: {}]
  %s2 = sld [smem:[#allocation0]]
  $region18: #{tpu_custom_call.1} parent=0
    _
  %s4 = ssub.s32 1, %s2
  %s5 = scalar_select 0, %s4, %s2
  $region1: #{tpu_custom_call.1} parent=0
    #allocation2 [shape = 'u8[1024]{0}', space=vmem, size = 0x400, scoped, tag = 'input window, operand 0, single buffered']
    #allocation3 [shape = 's32[1]{0}', space=sflag, size = 0x4, scoped, tag = 'scoped memory for tpu_custom_call.1']
    #allocation4 [shape = 's32[1]{0}', space=sflag, size = 0x4, scoped, tag = 'scoped memory for tpu_custom_call.1']
    #allocation5 [shape = 'u8[2048]{0}', space=vmem, size = 0x800, scoped, tag = 'output window, operand 0, single buffered']
    %6 = vsyncpa [#allocation3], 0
    %7 = vsyncpa [#allocation4], 0
    // Predicated region
    $region2: #{tpu_custom_call.1} parent=1 // pred_check
      _
    $region3: #{tpu_custom_call.1} parent=1 // pred_check_branch
      %9 = sbr.rel (0) target = $region5
    $region4: #{tpu_custom_call.1} parent=1 // pred_region
      %11 = vsyncadd [#allocation3], 0
      %s13 = sshll.u32 %s0, 4
      %s14 = int_to_ptr.hbm [resolvable:$true] %s13
      %s15 = sshll.u32 [#allocation2], 4
      %s16 = int_to_ptr.vmem [resolvable:$true] %s15
      %18 = dma.hbm_to_vmem [thread:$0]  %s14, 32, %s16, [#allocation3]
    $region5: #{tpu_custom_call.1} parent=1 // pred_fallthru
      _
    // Predicated region
    $region6: #{tpu_custom_call.1} parent=1 // pred_check
      _
    $region7: #{tpu_custom_call.1} parent=1 // pred_check_branch
      %20 = sbr.rel (0) target = $region9
    $region8: #{tpu_custom_call.1} parent=1 // pred_region
      %22 = dma.done [#allocation3], 32
    $region9: #{tpu_custom_call.1} parent=1 // pred_fallthru
      _
    %v23 = vld [vmem:[#allocation2] sm:$0x3]
    %v24 = vlaneseq
    %vm25 = vcmp.ge.s32.totalorder %v24, 0
    %vm26 = vcmp.lt.s32.totalorder %v24, 256
    %vm27 = vmand %vm25, %vm26
    %28 = vst.msk [vmem:[#allocation5] sm:$0x3] %vm27, %v23
    %29 = vst.msk [vmem:[#allocation5 + $0x2] sm:$0x3] %vm27, %v23
    // Predicated region
    $region10: #{tpu_custom_call.1} parent=1 // pred_check
      _
    $region11: #{tpu_custom_call.1} parent=1 // pred_check_branch
      %31 = sbr.rel (0) target = $region13
    $region12: #{tpu_custom_call.1} parent=1 // pred_region
      %33 = vsyncadd [#allocation4], 0
      %s34 = sshll.u32 [#allocation5], 4
      %s35 = int_to_ptr.vmem [resolvable:$true] %s34
      %s36 = sshll.u32 %s1, 4
      %s37 = int_to_ptr.hbm [resolvable:$true] %s36
      %42 = dma.vmem_to_hbm [thread:$0]  %s35, 64, %s37, [#allocation4], 32, 32, 2
    $region13: #{tpu_custom_call.1} parent=1 // pred_fallthru
      _
    // Predicated region
    $region14: #{tpu_custom_call.1} parent=1 // pred_check
      _
    $region15: #{tpu_custom_call.1} parent=1 // pred_check_branch
      %44 = sbr.rel (0) target = $region17
    $region16: #{tpu_custom_call.1} parent=1 // pred_region
      %46 = dma.done [#allocation4], 64
    $region17: #{tpu_custom_call.1} parent=1 // pred_fallthru
      _
    %47 = vsyncpa [#allocation3], 1
    %48 = vsyncpa [#allocation4], 1

</llo_original>
